<compile_context>
chip_gen: v5e
topology: v5e:2x2
jax: 0.10.0
libtpu: 0.0.40
codegen_flags: <defaults>
</compile_context>

<pallas_src>
import jax
import jax.numpy as jnp
from jax import lax
from jax.experimental import pallas as pl
from jax.experimental.pallas import tpu as pltpu


def _round_up(x, m):
    return ((x + m - 1) // m) * m


# ----------------------------- Pallas kernels -----------------------------

def _mlp_chain(h, w_refs, b_refs, relu_flags):
    """Shared pointwise (kernel-size-1 conv) chain used by both kernels."""
    for w_r, b_r, relu in zip(w_refs, b_refs, relu_flags):
        h = jnp.dot(h, w_r[...], preferred_element_type=jnp.float32) + b_r[...]
        if relu:
            h = jnp.maximum(h, 0.0)
    return h


def vote_module_forward(seed_xyz, seed_feats, hidden_ws, hidden_bs, w_ro, b_ro):
    """VoteModule (vote_per_seed=1): shared MLP -> fused (feature residual |
    xyz offset) head -> add to seeds -> L2-normalize features (norm_feats=True).

    seed_xyz: (B, N, 3), seed_feats: (B, N, C).
    w_ro: (C_hidden, C_pad) fused [residual(C) | offset(3) | zero-pad] weight,
    b_ro: (1, C_pad); C_pad is a multiple of 128 so the kernel's output store
    is lane-dense.  Returns vote_xyz (B, N, 3), vote_feats (B, N, C).
    """
    B, N, C = seed_feats.shape
    R = B * N
    n_hidden = len(hidden_ws)
    c_pad = w_ro.shape[1]
    pad = c_pad - (C + 3)

    xyz_flat = seed_xyz.reshape(R, 3)
    feat_flat = seed_feats.reshape(R, C)

    # 2-way row split: keeps both v7x TensorCores busy; on v5e/v6e it is just a
    # 2-step serial loop over large row tiles (minimal per-step overhead).
    n_tiles = 2 if (R % 16 == 0) else 1
    r_tile = R // n_tiles

    def kernel(*refs):
        xyz_ref, feat_ref = refs[0], refs[1]
        p = 2
        hw = refs[p:p + n_hidden]; p += n_hidden
        hb = refs[p:p + n_hidden]; p += n_hidden
        w_ro_r, b_ro_r = refs[p], refs[p + 1]
        out_ref = refs[p + 2]

        f0 = feat_ref[...].astype(jnp.float32)                      # (r_tile, C)
        h = _mlp_chain(f0, hw, hb, (True,) * n_hidden)
        comb = jnp.dot(h, w_ro_r[...],
                       preferred_element_type=jnp.float32) + b_ro_r[...]
        vf = f0 + comb[:, :C]                                       # lane-0 aligned
        vxyz = xyz_ref[...].astype(jnp.float32) + comb[:, C:C + 3]
        inv = lax.rsqrt(jnp.sum(vf * vf, axis=-1, keepdims=True) + 1e-12)
        pieces = [vf * inv, vxyz]
        if pad > 0:
            pieces.append(jnp.zeros((r_tile, pad), jnp.float32))
        # Single lane-dense (r_tile, c_pad) store.
        out_ref[...] = jnp.concatenate(pieces, axis=-1).astype(out_ref.dtype)

    in_specs = [pl.BlockSpec((r_tile, 3), lambda i: (i, 0)),
                pl.BlockSpec((r_tile, C), lambda i: (i, 0))]
    in_specs += [pl.BlockSpec(w.shape, lambda i: (0, 0)) for w in hidden_ws]
    in_specs += [pl.BlockSpec(b.shape, lambda i: (0, 0)) for b in hidden_bs]
    in_specs += [pl.BlockSpec(w_ro.shape, lambda i: (0, 0)),
                 pl.BlockSpec(b_ro.shape, lambda i: (0, 0))]

    out = pl.pallas_call(
        kernel,
        out_shape=jax.ShapeDtypeStruct((R, c_pad), seed_feats.dtype),
        grid=(n_tiles,),
        in_specs=in_specs,
        out_specs=pl.BlockSpec((r_tile, c_pad), lambda i: (i, 0)),
        compiler_params=pltpu.CompilerParams(dimension_semantics=("parallel",)),
    )(xyz_flat, feat_flat, *hidden_ws, *hidden_bs, w_ro, b_ro)

    vote_feats = out[:, :C].reshape(B, N, C)
    vote_xyz = out[:, C:C + 3].reshape(B, N, 3)
    return vote_xyz, vote_feats


def sa_and_pred_forward(grouped, sa_ws, sa_bs, pred_ws, pred_bs, pred_relu):
    """Fused PointnetSAModule shared MLP + max-pool over K + prediction head.

    grouped: (K, G, C_in) neighbour-major grouped features (G = B*M groups).
    The shared MLP runs once on the flattened (K*G_tile, C_in) slab (single
    full-width MXU pass), the K-max-pool is done with contiguous sublane
    slices, and the prediction MLP continues in VMEM (no HBM round trip).
    Returns (G, C_pred_padded) predictions (caller slices the real channels).
    """
    K, G, C_in = grouped.shape
    n_sa = len(sa_ws)
    n_pred = len(pred_ws)
    C_pred = pred_ws[-1].shape[1]          # already padded to a multiple of 128

    n_tiles = 2 if (G % 16 == 0) else 1
    g_tile = G // n_tiles

    def kernel(*refs):
        g_ref = refs[0]
        p = 1
        sw = refs[p:p + n_sa]; p += n_sa
        sb = refs[p:p + n_sa]; p += n_sa
        pw = refs[p:p + n_pred]; p += n_pred
        pb = refs[p:p + n_pred]; p += n_pred
        out_ref = refs[p]

        # One MXU pass over all K * g_tile neighbour rows (leading-dim merge,
        # lane layout unchanged).
        h = g_ref[...].astype(jnp.float32).reshape(K * g_tile, C_in)
        h = _mlp_chain(h, sw, sb, (True,) * n_sa)
        # Max-pool over the K neighbours: K-1 vmax ops on contiguous,
        # 8-aligned sublane slices (no strided gathers, no relayout).
        acc = h[0:g_tile]
        for k in range(1, K):
            acc = jnp.maximum(acc, h[k * g_tile:(k + 1) * g_tile])
        # Prediction head fused in: pooled features never touch HBM.
        pred = _mlp_chain(acc, pw, pb, pred_relu)
        out_ref[...] = pred.astype(out_ref.dtype)

    in_specs = [pl.BlockSpec((K, g_tile, C_in), lambda i: (0, i, 0))]
    in_specs += [pl.BlockSpec(w.shape, lambda i: (0, 0)) for w in sa_ws]
    in_specs += [pl.BlockSpec(b.shape, lambda i: (0, 0)) for b in sa_bs]
    in_specs += [pl.BlockSpec(w.shape, lambda i: (0, 0)) for w in pred_ws]
    in_specs += [pl.BlockSpec(b.shape, lambda i: (0, 0)) for b in pred_bs]

    return pl.pallas_call(
        kernel,
        out_shape=jax.ShapeDtypeStruct((G, C_pred), grouped.dtype),
        grid=(n_tiles,),
        in_specs=in_specs,
        out_specs=pl.BlockSpec((g_tile, C_pred), lambda i: (i, 0)),
        compiler_params=pltpu.CompilerParams(dimension_semantics=("parallel",)),
    )(grouped, *sa_ws, *sa_bs, *pred_ws, *pred_bs)


# ------------------------------- JAX glue ----------------------------------

# TODO(synk): furthest-point-sampling is an inherently sequential argmax loop;
# kept in plain JAX (lax.fori_loop) rather than a Pallas kernel.
def furthest_point_sample(points, npoint):
    B, N, _ = points.shape

    def body(i, state):
        dist, idxs, farthest = state
        idxs = idxs.at[:, i].set(farthest)
        centroid = jnp.take_along_axis(points, farthest[:, None, None], axis=1)
        d = jnp.sum((points - centroid) ** 2, axis=-1)
        dist = jnp.minimum(dist, d)
        farthest = jnp.argmax(dist, axis=-1).astype(jnp.int32)
        return dist, idxs, farthest

    init = (jnp.full((B, N), 1e10, jnp.float32),
            jnp.zeros((B, npoint), jnp.int32),
            jnp.zeros((B,), jnp.int32))
    _, idxs, _ = jax.lax.fori_loop(0, npoint, body, init)
    return idxs


# TODO(synk): ball-query + index gather are data-dependent gathers; kept as JAX
# glue.  At production sizes this should become a PrefetchScalarGridSpec gather
# inside the aggregation kernel to avoid materializing the (B, M, K, C) tensor.
def ball_query(radius, nsample, xyz, new_xyz):
    """xyz (B,N,3), new_xyz (B,M,3) -> int32 (B,M,nsample); first-found-in-order
    semantics with padding by the first valid index (pointnet2 behaviour).
    Proposals with no point in radius fall back to index 0."""
    N = xyz.shape[1]
    d2 = jnp.sum((new_xyz[:, :, None, :] - xyz[:, None, :, :]) ** 2, axis=-1)
    mask = d2 < radius ** 2
    cand = jnp.where(mask, jnp.arange(N, dtype=jnp.int32)[None, None, :], N)
    cand = jnp.sort(cand, axis=-1)[:, :, :nsample]
    first = cand[:, :, :1]
    out = jnp.where(cand == N, first, cand)
    return jnp.where(out == N, 0, out).astype(jnp.int32)


def _gather_points(points, idx):
    """points (B, N, D), idx (B, ...) int32 -> (B, ..., D)."""
    B, _, D = points.shape
    flat = idx.reshape(B, -1)
    out = jnp.take_along_axis(points, flat[..., None], axis=1)
    return out.reshape(idx.shape + (D,))


def _dense_init(key, c_in, c_out, scale=0.1):
    kw, kb = jax.random.split(key)
    w = scale * jax.random.normal(kw, (c_in, c_out), jnp.float32)
    b = scale * jax.random.normal(kb, (1, c_out), jnp.float32)
    return w, b


# ------------------------------- VoteHead ----------------------------------

class VoteHeadPallas:
    def __init__(self, num_classes, num_sizes, num_dir_bins,
                 vote_module_cfg, vote_aggregation_cfg,
                 feat_channels=(128, 128), key=None):
        self.num_classes = num_classes
        self.num_proposal = vote_aggregation_cfg['num_point']
        assert vote_aggregation_cfg['mlp_channels'][0] == vote_module_cfg['in_channels']
        self.radius = vote_aggregation_cfg['radius']
        self.nsample = vote_aggregation_cfg['num_sample']
        self.use_xyz = vote_aggregation_cfg.get('use_xyz', True)
        # NOTE: vote_per_seed is assumed to be 1 (default in VoteNet configs).

        keys = iter(jax.random.split(key, 64))

        # VoteModule: Conv1d(k=1)+BN(identity)+ReLU stack, then conv_out which
        # produces (C + 3) channels = feature residual | xyz offset (fused,
        # zero-padded to a multiple of 128 for a lane-dense kernel output).
        c_in = vote_module_cfg['in_channels']
        dims = [c_in] + list(vote_module_cfg['conv_channels'])
        self.vote_hw, self.vote_hb = [], []
        for a, b in zip(dims[:-1], dims[1:]):
            w, bb = _dense_init(next(keys), a, b)
            self.vote_hw.append(w)
            self.vote_hb.append(bb)
        w_res, b_res = _dense_init(next(keys), dims[-1], c_in)
        w_off, b_off = _dense_init(next(keys), dims[-1], 3)
        c_vote_pad = _round_up(c_in + 3, 128)
        extra = c_vote_pad - (c_in + 3)
        self.vote_w_ro = jnp.pad(jnp.concatenate([w_res, w_off], axis=1),
                                 ((0, 0), (0, extra)))              # (C_h, C_pad)
        self.vote_b_ro = jnp.pad(jnp.concatenate([b_res, b_off], axis=1),
                                 ((0, 0), (0, extra)))              # (1, C_pad)

        # PointnetSAModule shared MLP (Conv2d k=1 + BN(identity) + ReLU).
        mlp = list(vote_aggregation_cfg['mlp_channels'])
        sa_dims = [mlp[0] + (3 if self.use_xyz else 0)] + mlp[1:]
        self.sa_w, self.sa_b = [], []
        for a, b in zip(sa_dims[:-1], sa_dims[1:]):
            w, bb = _dense_init(next(keys), a, b)
            self.sa_w.append(w)
            self.sa_b.append(bb)

        # Prediction head: GorillaConv (conv+BN(identity)+ReLU) * len(feat_channels)
        # followed by a plain Conv1d "conv_out".  The conv_out columns are
        # zero-padded to a multiple of 128 for lane-dense output stores.
        conv_out_channel = 2 + 3 + num_dir_bins * 2 + num_sizes * 4 + num_classes
        self.conv_out_channel = conv_out_channel
        c_pad = _round_up(conv_out_channel, 128)
        pred_dims = [mlp[-1]] + list(feat_channels) + [conv_out_channel]
        self.pred_w, self.pred_b = [], []
        for a, b in zip(pred_dims[:-1], pred_dims[1:]):
            w, bb = _dense_init(next(keys), a, b)
            self.pred_w.append(w)
            self.pred_b.append(bb)
        w_last, b_last = self.pred_w[-1], self.pred_b[-1]
        self.pred_w[-1] = jnp.pad(w_last, ((0, 0), (0, c_pad - conv_out_channel)))
        self.pred_b[-1] = jnp.pad(b_last, ((0, 0), (0, c_pad - conv_out_channel)))
        self.pred_relu = tuple([True] * len(feat_channels) + [False])

    def forward(self, feat_dict, sample_mod, rng=None):
        assert sample_mod in ['vote', 'seed', 'random']
        seed_points = feat_dict['fp_xyz'][-1]         # (B, N, 3)
        seed_features = feat_dict['fp_features'][-1]  # (B, N, C) channel-last
        seed_indices = feat_dict['fp_indices'][-1]    # (B, N)

        # 1. Generate vote points from seed points (Pallas kernel).
        vote_points, vote_features = vote_module_forward(
            seed_points, seed_features, self.vote_hw, self.vote_hb,
            self.vote_w_ro, self.vote_b_ro)

        results = dict(seed_points=seed_points, seed_indices=seed_indices,
                       vote_points=vote_points, vote_features=vote_features)

        B, num_seed = seed_points.shape[:2]
        if sample_mod == 'vote':
            # indices=None in PyTorch -> SA module runs FPS on the vote points.
            sample_indices = furthest_point_sample(vote_points, self.num_proposal)
        elif sample_mod == 'seed':
            sample_indices = furthest_point_sample(seed_points, self.num_proposal)
        else:  # 'random'
            if rng is None:
                rng = jax.random.PRNGKey(1)
            sample_indices = jax.random.randint(
                rng, (B, self.num_proposal), 0, num_seed, dtype=jnp.int32)

        # 2. Aggregate votes: sample -> ball-query group, then one fused Pallas
        #    kernel does shared MLP -> K max-pool -> prediction head.
        M, K = self.num_proposal, self.nsample
        aggregated_points = _gather_points(vote_points, sample_indices)          # (B, M, 3)
        group_idx = ball_query(self.radius, K, vote_points, aggregated_points)
        grouped_xyz = _gather_points(vote_points, group_idx) - aggregated_points[:, :, None, :]
        grouped_feats = _gather_points(vote_features, group_idx)                 # (B, M, K, C)
        grouped = (jnp.concatenate([grouped_xyz, grouped_feats], axis=-1)
                   if self.use_xyz else grouped_feats)                           # (B, M, K, C_in)
        # Neighbour-major layout so each k-slice is a contiguous (G, C_in) tile.
        c_in_sa = grouped.shape[-1]
        grouped_kmajor = jnp.transpose(grouped, (2, 0, 1, 3)).reshape(K, B * M, c_in_sa)

        results['aggregated_points'] = aggregated_points
        results['aggregated_indices'] = sample_indices

        # 3. Predict bbox / score (fused with step 2's MLP).  layout: (B, M, C_out).
        pred_padded = sa_and_pred_forward(
            grouped_kmajor, self.sa_w, self.sa_b,
            self.pred_w, self.pred_b, self.pred_relu)                            # (B*M, c_pad)
        predictions = pred_padded[:, :self.conv_out_channel].reshape(
            B, M, self.conv_out_channel)
        results['predictions'] = predictions
        return results


# --------------------------------- main -------------------------------------

if __name__ == "__main__":
    key = jax.random.PRNGKey(0)
    k_xyz, k_feat, k_param = jax.random.split(key, 3)

    B, N, C = 2, 64, 32          # batch, num seed points, seed feature channels
    M, K = 16, 8                 # num proposals, ball-query group size
    num_classes, num_sizes, num_dir_bins = 4, 3, 4

    head = VoteHeadPallas(
        num_classes=num_classes, num_sizes=num_sizes, num_dir_bins=num_dir_bins,
        vote_module_cfg=dict(in_channels=C, vote_per_seed=1, conv_channels=(C, C)),
        vote_aggregation_cfg=dict(num_point=M, radius=0.4, num_sample=K,
                                  mlp_channels=[C, 32, 32], use_xyz=True),
        feat_channels=(32, 32),
        key=k_param)

    seed_points = jax.random.uniform(k_xyz, (B, N, 3), jnp.float32)
    seed_features = jax.random.normal(k_feat, (B, N, C), jnp.float32)
    seed_indices = jnp.tile(jnp.arange(N, dtype=jnp.int32)[None], (B, 1))
    feat_dict = dict(fp_xyz=[seed_points],
                     fp_features=[seed_features],
                     fp_indices=[seed_indices])

    results = head.forward(feat_dict, sample_mod='vote')
    jax.block_until_ready(results['predictions'])

    expected_c = 2 + 3 + num_dir_bins * 2 + num_sizes * 4 + num_classes  # 29
    assert results['predictions'].shape == (B, M, expected_c)
    assert results['vote_points'].shape == (B, N, 3)
    assert results['vote_features'].shape == (B, N, C)
    assert results['aggregated_points'].shape == (B, M, 3)
    assert results['aggregated_indices'].shape == (B, M)
    assert bool(jnp.all(jnp.isfinite(results['predictions'])))
    assert bool(jnp.all(jnp.isfinite(results['vote_features'])))
    # Feature L2-normalization sanity check (norm_feats=True in VoteModule).
    norms = jnp.linalg.norm(results['vote_features'], axis=-1)
    assert bool(jnp.all(jnp.abs(norms - 1.0) < 1e-3))
    print("KERNEL_OK")
</pallas_src>

<mosaic_0001>
module attributes {stable_mosaic.version = 11 : i64} {
  func.func @kernel(%arg0: i32, %arg1: memref<64x3xf32, #tpu.memory_space<vmem>>, %arg2: memref<64x32xf32, #tpu.memory_space<vmem>>, %arg3: memref<32x32xf32, #tpu.memory_space<vmem>>, %arg4: memref<32x32xf32, #tpu.memory_space<vmem>>, %arg5: memref<1x32xf32, #tpu.memory_space<vmem>>, %arg6: memref<1x32xf32, #tpu.memory_space<vmem>>, %arg7: memref<32x128xf32, #tpu.memory_space<vmem>>, %arg8: memref<1x128xf32, #tpu.memory_space<vmem>>, %arg9: memref<64x128xf32, #tpu.memory_space<vmem>>) attributes {dimension_semantics = [#tpu.dimension_semantics<parallel>], iteration_bounds = array<i64: 2>, scalar_prefetch = 0 : i64, scratch_operands = 0 : i64, tpu.core_type = #tpu.core_type<tc>, window_params = [{transform_indices = @transform_0, window_bounds = array<i64: 64, 3>}, {transform_indices = @transform_1, window_bounds = array<i64: 64, 32>}, {pipeline_mode = #tpu.pipeline_mode<synchronous>, transform_indices = @transform_2, window_bounds = array<i64: 32, 32>}, {pipeline_mode = #tpu.pipeline_mode<synchronous>, transform_indices = @transform_3, window_bounds = array<i64: 32, 32>}, {pipeline_mode = #tpu.pipeline_mode<synchronous>, transform_indices = @transform_4, window_bounds = array<i64: 1, 32>}, {pipeline_mode = #tpu.pipeline_mode<synchronous>, transform_indices = @transform_5, window_bounds = array<i64: 1, 32>}, {pipeline_mode = #tpu.pipeline_mode<synchronous>, transform_indices = @transform_6, window_bounds = array<i64: 32, 128>}, {pipeline_mode = #tpu.pipeline_mode<synchronous>, transform_indices = @transform_7, window_bounds = array<i64: 1, 128>}, {transform_indices = @transform_8, window_bounds = array<i64: 64, 128>}]} {
    %c0 = arith.constant 0 : index
    %c0_0 = arith.constant 0 : index
    %0 = vector.load %arg2[%c0, %c0_0] : memref<64x32xf32, #tpu.memory_space<vmem>>, vector<64x32xf32>
    %c0_1 = arith.constant 0 : index
    %c0_2 = arith.constant 0 : index
    %1 = vector.load %arg3[%c0_1, %c0_2] : memref<32x32xf32, #tpu.memory_space<vmem>>, vector<32x32xf32>
    %cst = arith.constant dense<0.000000e+00> : vector<64x32xf32>
    %2 = tpu.matmul %0, %1, %cst {dimension_numbers = #tpu.dot_dimension_numbers<[1], [0], [0], [1], [0, 0, 1, 1], [], []>} : vector<64x32xf32>, vector<32x32xf32>, vector<64x32xf32> -> vector<64x32xf32>
    %c0_3 = arith.constant 0 : index
    %c0_4 = arith.constant 0 : index
    %3 = vector.load %arg5[%c0_3, %c0_4] : memref<1x32xf32, #tpu.memory_space<vmem>>, vector<1x32xf32>
    %4 = vector.broadcast %3 : vector<1x32xf32> to vector<64x32xf32>
    %5 = arith.addf %2, %4 : vector<64x32xf32>
    %cst_5 = arith.constant 0.000000e+00 : f32
    %6 = vector.broadcast %cst_5 : f32 to vector<64x32xf32>
    %7 = arith.maximumf %5, %6 : vector<64x32xf32>
    %c0_6 = arith.constant 0 : index
    %c0_7 = arith.constant 0 : index
    %8 = vector.load %arg4[%c0_6, %c0_7] : memref<32x32xf32, #tpu.memory_space<vmem>>, vector<32x32xf32>
    %cst_8 = arith.constant dense<0.000000e+00> : vector<64x32xf32>
    %9 = tpu.matmul %7, %8, %cst_8 {dimension_numbers = #tpu.dot_dimension_numbers<[1], [0], [0], [1], [0, 0, 1, 1], [], []>} : vector<64x32xf32>, vector<32x32xf32>, vector<64x32xf32> -> vector<64x32xf32>
    %c0_9 = arith.constant 0 : index
    %c0_10 = arith.constant 0 : index
    %10 = vector.load %arg6[%c0_9, %c0_10] : memref<1x32xf32, #tpu.memory_space<vmem>>, vector<1x32xf32>
    %11 = vector.broadcast %10 : vector<1x32xf32> to vector<64x32xf32>
    %12 = arith.addf %9, %11 : vector<64x32xf32>
    %cst_11 = arith.constant 0.000000e+00 : f32
    %13 = vector.broadcast %cst_11 : f32 to vector<64x32xf32>
    %14 = arith.maximumf %12, %13 : vector<64x32xf32>
    %c0_12 = arith.constant 0 : index
    %c0_13 = arith.constant 0 : index
    %15 = vector.load %arg7[%c0_12, %c0_13] : memref<32x128xf32, #tpu.memory_space<vmem>>, vector<32x128xf32>
    %cst_14 = arith.constant dense<0.000000e+00> : vector<64x128xf32>
    %16 = tpu.matmul %14, %15, %cst_14 {dimension_numbers = #tpu.dot_dimension_numbers<[1], [0], [0], [1], [0, 0, 1, 1], [], []>} : vector<64x32xf32>, vector<32x128xf32>, vector<64x128xf32> -> vector<64x128xf32>
    %c0_15 = arith.constant 0 : index
    %c0_16 = arith.constant 0 : index
    %17 = vector.load %arg8[%c0_15, %c0_16] : memref<1x128xf32, #tpu.memory_space<vmem>>, vector<1x128xf32>
    %18 = vector.broadcast %17 : vector<1x128xf32> to vector<64x128xf32>
    %19 = arith.addf %16, %18 : vector<64x128xf32>
    %20 = vector.extract_strided_slice %19 {offsets = [0, 0], sizes = [64, 32], strides = [1, 1]} : vector<64x128xf32> to vector<64x32xf32>
    %21 = arith.addf %0, %20 : vector<64x32xf32>
    %c0_17 = arith.constant 0 : index
    %c0_18 = arith.constant 0 : index
    %22 = vector.load %arg1[%c0_17, %c0_18] : memref<64x3xf32, #tpu.memory_space<vmem>>, vector<64x3xf32>
    %23 = vector.extract_strided_slice %19 {offsets = [0, 32], sizes = [64, 3], strides = [1, 1]} : vector<64x128xf32> to vector<64x3xf32>
    %24 = arith.addf %22, %23 : vector<64x3xf32>
    %25 = arith.mulf %21, %21 : vector<64x32xf32>
    %cst_19 = arith.constant dense<0.000000e+00> : vector<64xf32>
    %26 = vector.multi_reduction <add>, %25, %cst_19 [1] : vector<64x32xf32> to vector<64xf32>
    %27 = vector.shape_cast %26 : vector<64xf32> to vector<64x1xf32>
    %cst_20 = arith.constant 9.99999996E-13 : f32
    %28 = vector.broadcast %cst_20 : f32 to vector<64x1xf32>
    %29 = arith.addf %27, %28 : vector<64x1xf32>
    %30 = math.rsqrt %29 : vector<64x1xf32>
    %31 = vector.broadcast %30 : vector<64x1xf32> to vector<64x32xf32>
    %32 = arith.mulf %21, %31 : vector<64x32xf32>
    %cst_21 = arith.constant 0.000000e+00 : f32
    %33 = vector.broadcast %cst_21 : f32 to vector<64x93xf32>
    %34 = tpu.concatenate %32, %24, %33 in 1 : vector<64x32xf32>, vector<64x3xf32>, vector<64x93xf32> -> vector<64x128xf32>
    %c0_22 = arith.constant 0 : index
    %c0_23 = arith.constant 0 : index
    %35 = vector.load %arg9[%c0_22, %c0_23] : memref<64x128xf32, #tpu.memory_space<vmem>>, vector<64x128xf32>
    tpu.vector_store %arg9[%c0_22, %c0_23], %34 {strides = array<i32>} : memref<64x128xf32, #tpu.memory_space<vmem>>, vector<64x128xf32>,
    return
  }
  func.func @transform_0(%arg0: i32) -> (i32, i32) {
    %c0_i32 = arith.constant 0 : i32
    %c0_i32_0 = arith.constant 0 : i32
    return %arg0, %c0_i32 : i32, i32
  }
  func.func @transform_1(%arg0: i32) -> (i32, i32) {
    %c0_i32 = arith.constant 0 : i32
    %c0_i32_0 = arith.constant 0 : i32
    return %arg0, %c0_i32 : i32, i32
  }
  func.func @transform_2(%arg0: i32) -> (i32, i32) {
    %c0_i32 = arith.constant 0 : i32
    %c0_i32_0 = arith.constant 0 : i32
    %c0_i32_1 = arith.constant 0 : i32
    return %c0_i32, %c0_i32_0 : i32, i32
  }
  func.func @transform_3(%arg0: i32) -> (i32, i32) {
    %c0_i32 = arith.constant 0 : i32
    %c0_i32_0 = arith.constant 0 : i32
    %c0_i32_1 = arith.constant 0 : i32
    return %c0_i32, %c0_i32_0 : i32, i32
  }
  func.func @transform_4(%arg0: i32) -> (i32, i32) {
    %c0_i32 = arith.constant 0 : i32
    %c0_i32_0 = arith.constant 0 : i32
    %c0_i32_1 = arith.constant 0 : i32
    return %c0_i32, %c0_i32_0 : i32, i32
  }
  func.func @transform_5(%arg0: i32) -> (i32, i32) {
    %c0_i32 = arith.constant 0 : i32
    %c0_i32_0 = arith.constant 0 : i32
    %c0_i32_1 = arith.constant 0 : i32
    return %c0_i32, %c0_i32_0 : i32, i32
  }
  func.func @transform_6(%arg0: i32) -> (i32, i32) {
    %c0_i32 = arith.constant 0 : i32
    %c0_i32_0 = arith.constant 0 : i32
    %c0_i32_1 = arith.constant 0 : i32
    return %c0_i32, %c0_i32_0 : i32, i32
  }
  func.func @transform_7(%arg0: i32) -> (i32, i32) {
    %c0_i32 = arith.constant 0 : i32
    %c0_i32_0 = arith.constant 0 : i32
    %c0_i32_1 = arith.constant 0 : i32
    return %c0_i32, %c0_i32_0 : i32, i32
  }
  func.func @transform_8(%arg0: i32) -> (i32, i32) {
    %c0_i32 = arith.constant 0 : i32
    %c0_i32_0 = arith.constant 0 : i32
    return %arg0, %c0_i32 : i32, i32
  }
}

</mosaic_0001>

<llo_original>
// kernel: tpu_custom_call.1
$region0: #{tpu_custom_call.1}
  #allocation0 [shape = 'u32[]', space=smem, size = 0x4, offset = 0x4, fixed_abs, tag = 'smem constant byte address 0x4 - core index']
  #allocation1 [shape = 'u32[72,128]{1,0:T(1,128)}', space=vmem, size = 0x9000, scoped, tag = 'internal scratch']
  %s0 = inlined_call_operand.vmem [shape: f32[128,3], index: 0, kind: input, shape index: {}]
  %s1 = inlined_call_operand.vmem [shape: f32[128,32], index: 1, kind: input, shape index: {}]
  %s2 = inlined_call_operand.vmem [shape: f32[32,32], index: 2, kind: input, shape index: {}]
  %s3 = inlined_call_operand.vmem [shape: f32[32,32], index: 3, kind: input, shape index: {}]
  %s4 = inlined_call_operand.vmem [shape: f32[1,32], index: 4, kind: input, shape index: {}]
  %s5 = inlined_call_operand.vmem [shape: f32[1,32], index: 5, kind: input, shape index: {}]
  %s6 = inlined_call_operand.vmem [shape: f32[32,128], index: 6, kind: input, shape index: {}]
  %s7 = inlined_call_operand.vmem [shape: f32[1,128], index: 7, kind: input, shape index: {}]
  %s8 = inlined_call_operand.hbm [shape: f32[128,128], index: 8, kind: output, shape index: {}]
  %s9 = sld [smem:[#allocation0]]
  $region65: #{tpu_custom_call.1} parent=0
    _
  %s11 = ssub.s32 1, %s9
  %s12 = scalar_select 0, %s11, %s9
  $region1: #{tpu_custom_call.1} parent=0
    #allocation2 [shape = 'u8[65536]{0}', space=vmem, size = 0x10000, scoped, tag = 'output window, operand 0']
    #allocation3 [shape = 's32[2]{0}', space=sflag, size = 0x8, scoped, tag = 'scoped memory for tpu_custom_call.1']
    %13 = vsyncpa [#allocation3], 0
    %s14 = scalar_lea.sflag [#allocation3], 1
    %15 = vsyncpa %s14, 0
    loop: start=0, step=1, limit=4
    $region2: #{tpu_custom_call.1} parent=1 // loop_pre_header
      _
    $region3: #{tpu_custom_call.1} parent=1 // loop_header
      %s17 = sphi 0, %s21
      %p18 = scmp.ge.s32.totalorder %s17, 4
      %s27 = sphi 0, %s29
      %s30 = sphi 0, %s27
      %s31 = sphi 0, %s30
      %s47 = sphi 0, %s31
      %s53 = sphi 0, %s55
      %s56 = sphi 0, %s53
      %s57 = sphi 0, %s56
      %s73 = sphi 0, %s57
      %s77 = sphi 0, %s77
      %s79 = sphi 0, %s77
      %s80 = sphi 0, %s79
      %s94 = sphi 0, %s80
      %s98 = sphi 0, %s98
      %s100 = sphi 0, %s98
      %s101 = sphi 0, %s100
      %s115 = sphi 0, %s101
      %s119 = sphi 0, %s119
      %s121 = sphi 0, %s119
      %s122 = sphi 0, %s121
      %s136 = sphi 0, %s122
      %s140 = sphi 0, %s140
      %s142 = sphi 0, %s140
      %s143 = sphi 0, %s142
      %s157 = sphi 0, %s143
      %s161 = sphi 0, %s161
      %s163 = sphi 0, %s161
      %s164 = sphi 0, %s163
      %s178 = sphi 0, %s164
      %s182 = sphi 0, %s182
      %s184 = sphi 0, %s182
      %s185 = sphi 0, %s184
      %s199 = sphi 0, %s185
      %s205 = sphi 0, %s207
      %s208 = sphi 0, %s205
      %s209 = sphi 0, %s208
      %s225 = sphi 0, %s209
    $region4: #{tpu_custom_call.1} parent=1 // loop_header_branch
      %20 = sbr.rel (%p18) target = $region8
    $region5: #{tpu_custom_call.1} parent=1 // loop_body
      %s22 = ssub.s32 %s17, 1
      %s23 = ssub.s32 %s17, 2
      %s24 = sadd.s32 %s17, 1
      %s25 = ssub.s32 %s17, %s24
      %p26 = scmp.eq.s32.totalorder %s25, 0
      %s28 = sadd.s32 %s27, 1
      %s29 = scalar_select %p26, %s27, %s28
      %p32 = pneg %p26
      %p33 = scmp.eq.s32.totalorder %s17, 1
      %p34 = por %p32, %p33
      %p35 = scmp.ne.s32.totalorder %s27, %s30
      %p36 = scmp.eq.s32.totalorder %s17, 0
      %p37 = por %p35, %p36
      %p38 = scmp.ne.s32.totalorder %s27, %s30
      %p39 = scmp.eq.s32.totalorder %s22, 1
      %p40 = por %p38, %p39
      %p41 = scmp.ne.s32.totalorder %s30, %s31
      %p42 = scmp.eq.s32.totalorder %s22, 0
      %p43 = por %p41, %p42
      %p44 = scmp.ne.s32.totalorder %s30, %s31
      %p45 = scmp.eq.s32.totalorder %s23, 1
      %p46 = por %p44, %p45
      %p48 = scmp.ne.s32.totalorder %s31, %s47
      %p49 = scmp.eq.s32.totalorder %s23, 0
      %p50 = por %p48, %p49
      %s51 = ssub.s32 %s17, %s24
      %p52 = scmp.eq.s32.totalorder %s51, 0
      %s54 = sadd.s32 %s53, 1
      %s55 = scalar_select %p52, %s53, %s54
      %p58 = pneg %p52
      %p59 = scmp.eq.s32.totalorder %s17, 1
      %p60 = por %p58, %p59
      %p61 = scmp.ne.s32.totalorder %s53, %s56
      %p62 = scmp.eq.s32.totalorder %s17, 0
      %p63 = por %p61, %p62
      %p64 = scmp.ne.s32.totalorder %s53, %s56
      %p65 = scmp.eq.s32.totalorder %s22, 1
      %p66 = por %p64, %p65
      %p67 = scmp.ne.s32.totalorder %s56, %s57
      %p68 = scmp.eq.s32.totalorder %s22, 0
      %p69 = por %p67, %p68
      %p70 = scmp.ne.s32.totalorder %s56, %s57
      %p71 = scmp.eq.s32.totalorder %s23, 1
      %p72 = por %p70, %p71
      %p74 = scmp.ne.s32.totalorder %s57, %s73
      %p75 = scmp.eq.s32.totalorder %s23, 0
      %p76 = por %p74, %p75
      %s78 = sadd.s32 %s77, 1
      %p81 = scmp.eq.s32.totalorder %s17, 1
      %p82 = scmp.ne.s32.totalorder %s77, %s79
      %p83 = scmp.eq.s32.totalorder %s17, 0
      %p84 = por %p82, %p83
      %p85 = scmp.ne.s32.totalorder %s77, %s79
      %p86 = scmp.eq.s32.totalorder %s22, 1
      %p87 = por %p85, %p86
      %p88 = scmp.ne.s32.totalorder %s79, %s80
      %p89 = scmp.eq.s32.totalorder %s22, 0
      %p90 = por %p88, %p89
      %p91 = scmp.ne.s32.totalorder %s79, %s80
      %p92 = scmp.eq.s32.totalorder %s23, 1
      %p93 = por %p91, %p92
      %p95 = scmp.ne.s32.totalorder %s80, %s94
      %p96 = scmp.eq.s32.totalorder %s23, 0
      %p97 = por %p95, %p96
      %s99 = sadd.s32 %s98, 1
      %p102 = scmp.eq.s32.totalorder %s17, 1
      %p103 = scmp.ne.s32.totalorder %s98, %s100
      %p104 = scmp.eq.s32.totalorder %s17, 0
      %p105 = por %p103, %p104
      %p106 = scmp.ne.s32.totalorder %s98, %s100
      %p107 = scmp.eq.s32.totalorder %s22, 1
      %p108 = por %p106, %p107
      %p109 = scmp.ne.s32.totalorder %s100, %s101
      %p110 = scmp.eq.s32.totalorder %s22, 0
      %p111 = por %p109, %p110
      %p112 = scmp.ne.s32.totalorder %s100, %s101
      %p113 = scmp.eq.s32.totalorder %s23, 1
      %p114 = por %p112, %p113
      %p116 = scmp.ne.s32.totalorder %s101, %s115
      %p117 = scmp.eq.s32.totalorder %s23, 0
      %p118 = por %p116, %p117
      %s120 = sadd.s32 %s119, 1
      %p123 = scmp.eq.s32.totalorder %s17, 1
      %p124 = scmp.ne.s32.totalorder %s119, %s121
      %p125 = scmp.eq.s32.totalorder %s17, 0
      %p126 = por %p124, %p125
      %p127 = scmp.ne.s32.totalorder %s119, %s121
      %p128 = scmp.eq.s32.totalorder %s22, 1
      %p129 = por %p127, %p128
      %p130 = scmp.ne.s32.totalorder %s121, %s122
      %p131 = scmp.eq.s32.totalorder %s22, 0
      %p132 = por %p130, %p131
      %p133 = scmp.ne.s32.totalorder %s121, %s122
      %p134 = scmp.eq.s32.totalorder %s23, 1
      %p135 = por %p133, %p134
      %p137 = scmp.ne.s32.totalorder %s122, %s136
      %p138 = scmp.eq.s32.totalorder %s23, 0
      %p139 = por %p137, %p138
      %s141 = sadd.s32 %s140, 1
      %p144 = scmp.eq.s32.totalorder %s17, 1
      %p145 = scmp.ne.s32.totalorder %s140, %s142
      %p146 = scmp.eq.s32.totalorder %s17, 0
      %p147 = por %p145, %p146
      %p148 = scmp.ne.s32.totalorder %s140, %s142
      %p149 = scmp.eq.s32.totalorder %s22, 1
      %p150 = por %p148, %p149
      %p151 = scmp.ne.s32.totalorder %s142, %s143
      %p152 = scmp.eq.s32.totalorder %s22, 0
      %p153 = por %p151, %p152
      %p154 = scmp.ne.s32.totalorder %s142, %s143
      %p155 = scmp.eq.s32.totalorder %s23, 1
      %p156 = por %p154, %p155
      %p158 = scmp.ne.s32.totalorder %s143, %s157
      %p159 = scmp.eq.s32.totalorder %s23, 0
      %p160 = por %p158, %p159
      %s162 = sadd.s32 %s161, 1
      %p165 = scmp.eq.s32.totalorder %s17, 1
      %p166 = scmp.ne.s32.totalorder %s161, %s163
      %p167 = scmp.eq.s32.totalorder %s17, 0
      %p168 = por %p166, %p167
      %p169 = scmp.ne.s32.totalorder %s161, %s163
      %p170 = scmp.eq.s32.totalorder %s22, 1
      %p171 = por %p169, %p170
      %p172 = scmp.ne.s32.totalorder %s163, %s164
      %p173 = scmp.eq.s32.totalorder %s22, 0
      %p174 = por %p172, %p173
      %p175 = scmp.ne.s32.totalorder %s163, %s164
      %p176 = scmp.eq.s32.totalorder %s23, 1
      %p177 = por %p175, %p176
      %p179 = scmp.ne.s32.totalorder %s164, %s178
      %p180 = scmp.eq.s32.totalorder %s23, 0
      %p181 = por %p179, %p180
      %s183 = sadd.s32 %s182, 1
      %p186 = scmp.eq.s32.totalorder %s17, 1
      %p187 = scmp.ne.s32.totalorder %s182, %s184
      %p188 = scmp.eq.s32.totalorder %s17, 0
      %p189 = por %p187, %p188
      %p190 = scmp.ne.s32.totalorder %s182, %s184
      %p191 = scmp.eq.s32.totalorder %s22, 1
      %p192 = por %p190, %p191
      %p193 = scmp.ne.s32.totalorder %s184, %s185
      %p194 = scmp.eq.s32.totalorder %s22, 0
      %p195 = por %p193, %p194
      %p196 = scmp.ne.s32.totalorder %s184, %s185
      %p197 = scmp.eq.s32.totalorder %s23, 1
      %p198 = por %p196, %p197
      %p200 = scmp.ne.s32.totalorder %s185, %s199
      %p201 = scmp.eq.s32.totalorder %s23, 0
      %p202 = por %p200, %p201
      %s203 = ssub.s32 %s17, %s24
      %p204 = scmp.eq.s32.totalorder %s203, 0
      %s206 = sadd.s32 %s205, 1
      %s207 = scalar_select %p204, %s205, %s206
      %p210 = pneg %p204
      %p211 = scmp.eq.s32.totalorder %s17, 1
      %p212 = por %p210, %p211
      %p213 = scmp.ne.s32.totalorder %s205, %s208
      %p214 = scmp.eq.s32.totalorder %s17, 0
      %p215 = por %p213, %p214
      %p216 = scmp.ne.s32.totalorder %s205, %s208
      %p217 = scmp.eq.s32.totalorder %s22, 1
      %p218 = por %p216, %p217
      %p219 = scmp.ne.s32.totalorder %s208, %s209
      %p220 = scmp.eq.s32.totalorder %s22, 0
      %p221 = por %p219, %p220
      %p222 = scmp.ne.s32.totalorder %s208, %s209
      %p223 = scmp.eq.s32.totalorder %s23, 1
      %p224 = por %p222, %p223
      %p226 = scmp.ne.s32.totalorder %s209, %s225
      %p227 = scmp.eq.s32.totalorder %s23, 0
      %p228 = por %p226, %p227
      %p229 = scmp.le.s32.totalorder 1, %s17
      %p230 = scmp.lt.s32.totalorder %s17, 3
      %p231 = pnand %p229, %p230
      %p232 = pneg %p231
      // Predicated region
      $region9: #{tpu_custom_call.1} parent=5 // pred_check
        _
      $region10: #{tpu_custom_call.1} parent=5 // pred_check_branch
        %234 = sbr.rel (%p231) target = $region12
      $region11: #{tpu_custom_call.1} parent=5 // pred_region
        %s235 = ssub.s32 %s17, 1
        // Predicated region
        $region13: #{tpu_custom_call.1} parent=11 // pred_check
          %p236 = pneg %p90
        $region14: #{tpu_custom_call.1} parent=11 // pred_check_branch
          %238 = sbr.rel (%p236) target = $region16
        $region15: #{tpu_custom_call.1} parent=11 // pred_region
          _
        $region16: #{tpu_custom_call.1} parent=11 // pred_fallthru
          _
        // Predicated region
        $region17: #{tpu_custom_call.1} parent=11 // pred_check
          %p239 = pneg %p111
        $region18: #{tpu_custom_call.1} parent=11 // pred_check_branch
          %241 = sbr.rel (%p239) target = $region20
        $region19: #{tpu_custom_call.1} parent=11 // pred_region
          _
        $region20: #{tpu_custom_call.1} parent=11 // pred_fallthru
          _
        // Predicated region
        $region21: #{tpu_custom_call.1} parent=11 // pred_check
          %p242 = pneg %p132
        $region22: #{tpu_custom_call.1} parent=11 // pred_check_branch
          %244 = sbr.rel (%p242) target = $region24
        $region23: #{tpu_custom_call.1} parent=11 // pred_region
          _
        $region24: #{tpu_custom_call.1} parent=11 // pred_fallthru
          _
        // Predicated region
        $region25: #{tpu_custom_call.1} parent=11 // pred_check
          %p245 = pneg %p153
        $region26: #{tpu_custom_call.1} parent=11 // pred_check_branch
          %247 = sbr.rel (%p245) target = $region28
        $region27: #{tpu_custom_call.1} parent=11 // pred_region
          _
        $region28: #{tpu_custom_call.1} parent=11 // pred_fallthru
          _
        // Predicated region
        $region29: #{tpu_custom_call.1} parent=11 // pred_check
          %p248 = pneg %p174
        $region30: #{tpu_custom_call.1} parent=11 // pred_check_branch
          %250 = sbr.rel (%p248) target = $region32
        $region31: #{tpu_custom_call.1} parent=11 // pred_region
          _
        $region32: #{tpu_custom_call.1} parent=11 // pred_fallthru
          _
        // Predicated region
        $region33: #{tpu_custom_call.1} parent=11 // pred_check
          %p251 = pneg %p195
        $region34: #{tpu_custom_call.1} parent=11 // pred_check_branch
          %253 = sbr.rel (%p251) target = $region36
        $region35: #{tpu_custom_call.1} parent=11 // pred_region
          _
        $region36: #{tpu_custom_call.1} parent=11 // pred_fallthru
          _
      $region12: #{tpu_custom_call.1} parent=5 // pred_fallthru
        _
      %p254 = scmp.lt.s32.totalorder %s17, 2
      // Predicated region
      $region37: #{tpu_custom_call.1} parent=5 // pred_check
        %p255 = pneg %p254
      $region38: #{tpu_custom_call.1} parent=5 // pred_check_branch
        %257 = sbr.rel (%p255) target = $region40
      $region39: #{tpu_custom_call.1} parent=5 // pred_region
        // Predicated region
        $region41: #{tpu_custom_call.1} parent=39 // pred_check
          %p258 = pneg %p37
        $region42: #{tpu_custom_call.1} parent=39 // pred_check_branch
          %260 = sbr.rel (%p258) target = $region44
        $region43: #{tpu_custom_call.1} parent=39 // pred_region
          %s261 = smul.u32 8, %s17
          %p262 = scmp.lt.s32.totalorder %s261, 15
          %s263 = scalar_select %p262, %s261, 15
          %s264 = smul.addr %s263, 8
          %s265 = scalar_lea.vmem %s0, %s264
          %s266 = smul.u32 8, %s17
        $region44: #{tpu_custom_call.1} parent=39 // pred_fallthru
          _
        // Predicated region
        $region45: #{tpu_custom_call.1} parent=39 // pred_check
          %p267 = pneg %p63
        $region46: #{tpu_custom_call.1} parent=39 // pred_check_branch
          %269 = sbr.rel (%p267) target = $region48
        $region47: #{tpu_custom_call.1} parent=39 // pred_region
          %s270 = smul.u32 8, %s17
          %p271 = scmp.lt.s32.totalorder %s270, 15
          %s272 = scalar_select %p271, %s270, 15
          %s273 = smul.addr %s272, 8
          %s274 = scalar_lea.vmem %s1, %s273
          %s275 = smul.u32 8, %s17
        $region48: #{tpu_custom_call.1} parent=39 // pred_fallthru
          _
      $region40: #{tpu_custom_call.1} parent=5 // pred_fallthru
        _
      %p276 = scmp.le.s32.totalorder 1, %s17
      %p277 = scmp.lt.s32.totalorder %s17, 3
      %p278 = pnand %p276, %p277
      %p279 = pneg %p278
      // Predicated region
      $region49: #{tpu_custom_call.1} parent=5 // pred_check
        _
      $region50: #{tpu_custom_call.1} parent=5 // pred_check_branch
        %281 = sbr.rel (%p278) target = $region52
      $region51: #{tpu_custom_call.1} parent=5 // pred_region
        %s282 = ssub.s32 %s17, 1
        %s283 = smul.u32 8, %s22
        %p284 = scmp.lt.s32.totalorder %s283, 15
        %s285 = scalar_select %p284, %s283, 15
        %s286 = smul.addr %s285, 8
        %s287 = scalar_lea.vmem %s0, %s286
        %p288 = pneg %p43
        %p289 = pneg %p40
        %s290 = smul.u32 8, %s22
        %p291 = scmp.lt.s32.totalorder %s290, 15
        %s292 = scalar_select %p291, %s290, 15
        %s293 = smul.addr %s292, 8
        %s294 = scalar_lea.vmem %s1, %s293
        %p295 = pneg %p69
        %p296 = pneg %p66
        %p297 = pneg %p90
        %p298 = pneg %p87
        %p299 = pneg %p111
        %p300 = pneg %p108
        %p301 = pneg %p132
        %p302 = pneg %p129
        %p303 = pneg %p153
        %p304 = pneg %p150
        %p305 = pneg %p174
        %p306 = pneg %p171
        %p307 = pneg %p195
        %p308 = pneg %p192
        %p309 = pneg %p221
        %p310 = pneg %p218
        %s311 = sand.u32 %s208, 1
        %s312 = scalar_lea.sflag [#allocation3], %s311
        %s313 = sand.u32 %s208, 1
        %s314 = smul.addr %s313, 64
        %s315 = scalar_lea.vmem [#allocation2], %s314
        %s316 = smul.u32 8, %s22
        %p317 = scmp.lt.s32.totalorder %s316, 15
        %s318 = scalar_select %p317, %s316, 15
        %s319 = smul.addr %s318, 8
        %s320 = scalar_lea.vmem %s0, %s319
        %s321 = smul.u32 8, %s22
        %s322 = smul.u32 8, %s22
        %p323 = scmp.lt.s32.totalorder %s322, 15
        %s324 = scalar_select %p323, %s322, 15
        %s325 = smul.addr %s324, 8
        %s326 = scalar_lea.vmem %s1, %s325
        %s327 = smul.u32 8, %s22
        %s328 = smul.u32 8, %s22
        %v329 = vld [vmem:[%s326] sm:$0xff]
        %v330 = vld [vmem:[%s326 + $0x8] sm:$0xff]
        %v331 = vld [vmem:[%s326 + $0x10] sm:$0xff]
        %v332 = vld [vmem:[%s326 + $0x18] sm:$0xff]
        %v333 = vld [vmem:[%s326 + $0x20] sm:$0xff]
        %v334 = vld [vmem:[%s326 + $0x28] sm:$0xff]
        %v335 = vld [vmem:[%s326 + $0x30] sm:$0xff]
        %v336 = vld [vmem:[%s326 + $0x38] sm:$0xff]
        %v337 = vld [vmem:[%s2] sm:$0xff]
        %v338 = vld [vmem:[%s2 + $0x8] sm:$0xff]
        %v339 = vld [vmem:[%s2 + $0x10] sm:$0xff]
        %v340 = vld [vmem:[%s2 + $0x18] sm:$0xff]
        %v341 = vld [vmem:[%s4] sm:$0x1]
        %v343 = vperm.slane %v341, 0
        %vm345 = vcmask 261120
        %v347 = vsel %vm345, %v329, 0
        %v350 = vsel %vm345, %v330, 0
        %v353 = vsel %vm345, %v331, 0
        %v356 = vsel %vm345, %v332, 0
        %v359 = vsel %vm345, %v333, 0
        %v362 = vsel %vm345, %v334, 0
        %v365 = vsel %vm345, %v335, 0
        %v368 = vsel %vm345, %v336, 0
        %370 = vmatpush.msra.mxu0 0.0
        %371 = vmatpush.msra.mxu0 0.0
        %372 = vmatpush.msra.mxu0 0.0
        %373 = vmatpush.msra.mxu0 0.0
        %374 = vmatpush.msra.mxu0 0.0
        %375 = vmatpush.msra.mxu0 0.0
        %376 = vmatpush.msra.mxu0 0.0
        %377 = vmatpush.msra.mxu0 0.0
        %378 = vmatpush.msra.mxu0 0.0
        %379 = vmatpush.msra.mxu0 0.0
        %380 = vmatpush.msra.mxu0 0.0
        %381 = vmatpush.msra.mxu0 0.0
        %382 = vmatpush.msra.mxu0 %v340
        %383 = vmatpush.msra.mxu0 %v339
        %384 = vmatpush.msra.mxu0 %v338
        %385 = vmatpush.msra.mxu0 %v337
        %386 = vmatmul.f32.gmra.mxu0 %v347
        %v387 = vpop.f32.mrf.mxu0
        %v388 = vadd.f32 %v343, %v387
        %389 = vmatmul.f32.gmra.mxu0 %v350
        %v390 = vpop.f32.mrf.mxu0
        %v391 = vadd.f32 %v343, %v390
        %392 = vmatmul.f32.gmra.mxu0 %v353
        %v393 = vpop.f32.mrf.mxu0
        %v394 = vadd.f32 %v343, %v393
        %395 = vmatmul.f32.gmra.mxu0 %v356
        %v396 = vpop.f32.mrf.mxu0
        %v397 = vadd.f32 %v343, %v396
        %398 = vmatmul.f32.gmra.mxu0 %v359
        %v399 = vpop.f32.mrf.mxu0
        %v400 = vadd.f32 %v343, %v399
        %401 = vmatmul.f32.gmra.mxu0 %v362
        %v402 = vpop.f32.mrf.mxu0
        %v403 = vadd.f32 %v343, %v402
        %404 = vmatmul.f32.gmra.mxu0 %v365
        %v405 = vpop.f32.mrf.mxu0
        %v406 = vadd.f32 %v343, %v405
        %407 = vmatmul.f32.gmra.mxu0 %v368
        %v408 = vpop.f32.mrf.mxu0
        %v409 = vadd.f32 %v343, %v408
        %410 = vdwg.mxu0
        %v411 = vmax.f32 %v388, 0.0
        %v412 = vmax.f32 %v391, 0.0
        %v413 = vmax.f32 %v394, 0.0
        %v414 = vmax.f32 %v397, 0.0
        %v415 = vmax.f32 %v400, 0.0
        %v416 = vmax.f32 %v403, 0.0
        %v417 = vmax.f32 %v406, 0.0
        %v418 = vmax.f32 %v409, 0.0
        %v419 = vld [vmem:[%s3] sm:$0xff]
        %v420 = vld [vmem:[%s3 + $0x8] sm:$0xff]
        %v421 = vld [vmem:[%s3 + $0x10] sm:$0xff]
        %v422 = vld [vmem:[%s3 + $0x18] sm:$0xff]
        %v423 = vld [vmem:[%s5] sm:$0x1]
        %v425 = vperm.slane %v423, 0
        %v428 = vsel %vm345, %v411, 0
        %v431 = vsel %vm345, %v412, 0
        %v434 = vsel %vm345, %v413, 0
        %v437 = vsel %vm345, %v414, 0
        %v440 = vsel %vm345, %v415, 0
        %v443 = vsel %vm345, %v416, 0
        %v446 = vsel %vm345, %v417, 0
        %v449 = vsel %vm345, %v418, 0
        %451 = vmatpush.msra.mxu0 0.0
        %452 = vmatpush.msra.mxu0 0.0
        %453 = vmatpush.msra.mxu0 0.0
        %454 = vmatpush.msra.mxu0 0.0
        %455 = vmatpush.msra.mxu0 0.0
        %456 = vmatpush.msra.mxu0 0.0
        %457 = vmatpush.msra.mxu0 0.0
        %458 = vmatpush.msra.mxu0 0.0
        %459 = vmatpush.msra.mxu0 0.0
        %460 = vmatpush.msra.mxu0 0.0
        %461 = vmatpush.msra.mxu0 0.0
        %462 = vmatpush.msra.mxu0 0.0
        %463 = vmatpush.msra.mxu0 %v422
        %464 = vmatpush.msra.mxu0 %v421
        %465 = vmatpush.msra.mxu0 %v420
        %466 = vmatpush.msra.mxu0 %v419
        %467 = vmatmul.f32.gmra.mxu0 %v428
        %v468 = vpop.f32.mrf.mxu0
        %v469 = vadd.f32 %v425, %v468
        %470 = vmatmul.f32.gmra.mxu0 %v431
        %v471 = vpop.f32.mrf.mxu0
        %v472 = vadd.f32 %v425, %v471
        %473 = vmatmul.f32.gmra.mxu0 %v434
        %v474 = vpop.f32.mrf.mxu0
        %v475 = vadd.f32 %v425, %v474
        %476 = vmatmul.f32.gmra.mxu0 %v437
        %v477 = vpop.f32.mrf.mxu0
        %v478 = vadd.f32 %v425, %v477
        %479 = vmatmul.f32.gmra.mxu0 %v440
        %v480 = vpop.f32.mrf.mxu0
        %v481 = vadd.f32 %v425, %v480
        %482 = vmatmul.f32.gmra.mxu0 %v443
        %v483 = vpop.f32.mrf.mxu0
        %v484 = vadd.f32 %v425, %v483
        %485 = vmatmul.f32.gmra.mxu0 %v446
        %v486 = vpop.f32.mrf.mxu0
        %v487 = vadd.f32 %v425, %v486
        %488 = vmatmul.f32.gmra.mxu0 %v449
        %v489 = vpop.f32.mrf.mxu0
        %v490 = vadd.f32 %v425, %v489
        %491 = vdwg.mxu0
        %v492 = vmax.f32 %v469, 0.0
        %v493 = vmax.f32 %v472, 0.0
        %v494 = vmax.f32 %v475, 0.0
        %v495 = vmax.f32 %v478, 0.0
        %v496 = vmax.f32 %v481, 0.0
        %v497 = vmax.f32 %v484, 0.0
        %v498 = vmax.f32 %v487, 0.0
        %v499 = vmax.f32 %v490, 0.0
        %v500 = vld [vmem:[%s6] sm:$0xff]
        %v501 = vld [vmem:[%s6 + $0x8] sm:$0xff]
        %v502 = vld [vmem:[%s6 + $0x10] sm:$0xff]
        %v503 = vld [vmem:[%s6 + $0x18] sm:$0xff]
        %v504 = vld [vmem:[%s7] sm:$0x1]
        %v506 = vperm.slane %v504, 0
        %v509 = vsel %vm345, %v492, 0
        %v512 = vsel %vm345, %v493, 0
        %v515 = vsel %vm345, %v494, 0
        %v518 = vsel %vm345, %v495, 0
        %v521 = vsel %vm345, %v496, 0
        %v524 = vsel %vm345, %v497, 0
        %v527 = vsel %vm345, %v498, 0
        %v530 = vsel %vm345, %v499, 0
        %532 = vmatpush.msra.mxu0 0.0
        %533 = vmatpush.msra.mxu0 0.0
        %534 = vmatpush.msra.mxu0 0.0
        %535 = vmatpush.msra.mxu0 0.0
        %536 = vmatpush.msra.mxu0 0.0
        %537 = vmatpush.msra.mxu0 0.0
        %538 = vmatpush.msra.mxu0 0.0
        %539 = vmatpush.msra.mxu0 0.0
        %540 = vmatpush.msra.mxu0 0.0
        %541 = vmatpush.msra.mxu0 0.0
        %542 = vmatpush.msra.mxu0 0.0
        %543 = vmatpush.msra.mxu0 0.0
        %544 = vmatpush.msra.mxu0 %v503
        %545 = vmatpush.msra.mxu0 %v502
        %546 = vmatpush.msra.mxu0 %v501
        %547 = vmatpush.msra.mxu0 %v500
        %548 = vmatmul.f32.gmra.mxu0 %v509
        %v549 = vpop.f32.mrf.mxu0
        %v550 = vadd.f32 %v506, %v549
        %551 = vmatmul.f32.gmra.mxu0 %v512
        %v552 = vpop.f32.mrf.mxu0
        %v553 = vadd.f32 %v506, %v552
        %554 = vmatmul.f32.gmra.mxu0 %v515
        %v555 = vpop.f32.mrf.mxu0
        %v556 = vadd.f32 %v506, %v555
        %557 = vmatmul.f32.gmra.mxu0 %v518
        %v558 = vpop.f32.mrf.mxu0
        %v559 = vadd.f32 %v506, %v558
        %560 = vmatmul.f32.gmra.mxu0 %v521
        %v561 = vpop.f32.mrf.mxu0
        %v562 = vadd.f32 %v506, %v561
        %563 = vmatmul.f32.gmra.mxu0 %v524
        %v564 = vpop.f32.mrf.mxu0
        %v565 = vadd.f32 %v506, %v564
        %566 = vmatmul.f32.gmra.mxu0 %v527
        %v567 = vpop.f32.mrf.mxu0
        %v568 = vadd.f32 %v506, %v567
        %569 = vmatmul.f32.gmra.mxu0 %v530
        %v570 = vpop.f32.mrf.mxu0
        %v571 = vadd.f32 %v506, %v570
        %572 = vdwg.mxu0
        %v573 = vadd.f32 %v329, %v550
        %v574 = vadd.f32 %v330, %v553
        %v575 = vadd.f32 %v331, %v556
        %v576 = vadd.f32 %v332, %v559
        %v577 = vadd.f32 %v333, %v562
        %v578 = vadd.f32 %v334, %v565
        %v579 = vadd.f32 %v335, %v568
        %v580 = vadd.f32 %v336, %v571
        %v581 = vld [vmem:[%s320] sm:$0xff]
        %v582 = vld [vmem:[%s320 + $0x8] sm:$0xff]
        %v583 = vld [vmem:[%s320 + $0x10] sm:$0xff]
        %v584 = vld [vmem:[%s320 + $0x18] sm:$0xff]
        %v585 = vld [vmem:[%s320 + $0x20] sm:$0xff]
        %v586 = vld [vmem:[%s320 + $0x28] sm:$0xff]
        %v587 = vld [vmem:[%s320 + $0x30] sm:$0xff]
        %v588 = vld [vmem:[%s320 + $0x38] sm:$0xff]
        %597 = vrot.lane.b32.xlu0 %v550, 96
        %v598 = vpop.permute.xlu0 %597
        %599 = vrot.lane.b32.xlu0 %v553, 96
        %v600 = vpop.permute.xlu0 %599
        %601 = vrot.lane.b32.xlu0 %v556, 96
        %v602 = vpop.permute.xlu0 %601
        %603 = vrot.lane.b32.xlu0 %v559, 96
        %v604 = vpop.permute.xlu0 %603
        %605 = vrot.lane.b32.xlu0 %v562, 96
        %v606 = vpop.permute.xlu0 %605
        %607 = vrot.lane.b32.xlu0 %v565, 96
        %v608 = vpop.permute.xlu0 %607
        %609 = vrot.lane.b32.xlu0 %v568, 96
        %v610 = vpop.permute.xlu0 %609
        %611 = vrot.lane.b32.xlu0 %v571, 96
        %v612 = vpop.permute.xlu0 %611
        %v621 = vadd.f32 %v581, %v598
        %v622 = vadd.f32 %v582, %v600
        %v623 = vadd.f32 %v583, %v602
        %v624 = vadd.f32 %v584, %v604
        %v625 = vadd.f32 %v585, %v606
        %v626 = vadd.f32 %v586, %v608
        %v627 = vadd.f32 %v587, %v610
        %v628 = vadd.f32 %v588, %v612
        %v629 = vmul.f32 %v573, %v573
        %v630 = vmul.f32 %v574, %v574
        %v631 = vmul.f32 %v575, %v575
        %v632 = vmul.f32 %v576, %v576
        %v633 = vmul.f32 %v577, %v577
        %v634 = vmul.f32 %v578, %v578
        %v635 = vmul.f32 %v579, %v579
        %v636 = vmul.f32 %v580, %v580
        %v637 = vsel %vm345, %v629, 0.0
        %638 = vadd.xlane.f32.xlu0 %v637
        %v639 = vpop.xlane.xlu0 %638
        %v640 = vsel %vm345, %v630, 0.0
        %641 = vadd.xlane.f32.xlu0 %v640
        %v642 = vpop.xlane.xlu0 %641
        %v643 = vsel %vm345, %v631, 0.0
        %644 = vadd.xlane.f32.xlu0 %v643
        %v645 = vpop.xlane.xlu0 %644
        %v646 = vsel %vm345, %v632, 0.0
        %647 = vadd.xlane.f32.xlu0 %v646
        %v648 = vpop.xlane.xlu0 %647
        %v649 = vsel %vm345, %v633, 0.0
        %650 = vadd.xlane.f32.xlu0 %v649
        %v651 = vpop.xlane.xlu0 %650
        %v652 = vsel %vm345, %v634, 0.0
        %653 = vadd.xlane.f32.xlu0 %v652
        %v654 = vpop.xlane.xlu0 %653
        %v655 = vsel %vm345, %v635, 0.0
        %656 = vadd.xlane.f32.xlu0 %v655
        %v657 = vpop.xlane.xlu0 %656
        %v658 = vsel %vm345, %v636, 0.0
        %659 = vadd.xlane.f32.xlu0 %v658
        %v660 = vpop.xlane.xlu0 %659
        %v661 = vadd.f32 %v639, 1e-12
        %v662 = vadd.f32 %v642, 1e-12
        %v663 = vadd.f32 %v645, 1e-12
        %v664 = vadd.f32 %v648, 1e-12
        %v665 = vadd.f32 %v651, 1e-12
        %v666 = vadd.f32 %v654, 1e-12
        %v667 = vadd.f32 %v657, 1e-12
        %v668 = vadd.f32 %v660, 1e-12
        %v669 = vrsqrt.pop %v661
        %v670 = vmul.f32 %v669, %v661
        %v671 = vmul.f32 %v670, %v669
        %v672 = vmul.f32 0.5, %v671
        %v673 = vsub.f32 1.5, %v672
        %v674 = vmul.f32 %v669, %v673
        %vm675 = vweird.f32 %v661
        %vm676 = vweird.f32 %v669
        %vm677 = vmor %vm675, %vm676
        %v678 = vsel %vm677, %v669, %v674
        %v679 = vrsqrt.pop %v662
        %v680 = vmul.f32 %v679, %v662
        %v681 = vmul.f32 %v680, %v679
        %v682 = vmul.f32 0.5, %v681
        %v683 = vsub.f32 1.5, %v682
        %v684 = vmul.f32 %v679, %v683
        %vm685 = vweird.f32 %v662
        %vm686 = vweird.f32 %v679
        %vm687 = vmor %vm685, %vm686
        %v688 = vsel %vm687, %v679, %v684
        %v689 = vrsqrt.pop %v663
        %v690 = vmul.f32 %v689, %v663
        %v691 = vmul.f32 %v690, %v689
        %v692 = vmul.f32 0.5, %v691
        %v693 = vsub.f32 1.5, %v692
        %v694 = vmul.f32 %v689, %v693
        %vm695 = vweird.f32 %v663
        %vm696 = vweird.f32 %v689
        %vm697 = vmor %vm695, %vm696
        %v698 = vsel %vm697, %v689, %v694
        %v699 = vrsqrt.pop %v664
        %v700 = vmul.f32 %v699, %v664
        %v701 = vmul.f32 %v700, %v699
        %v702 = vmul.f32 0.5, %v701
        %v703 = vsub.f32 1.5, %v702
        %v704 = vmul.f32 %v699, %v703
        %vm705 = vweird.f32 %v664
        %vm706 = vweird.f32 %v699
        %vm707 = vmor %vm705, %vm706
        %v708 = vsel %vm707, %v699, %v704
        %v709 = vrsqrt.pop %v665
        %v710 = vmul.f32 %v709, %v665
        %v711 = vmul.f32 %v710, %v709
        %v712 = vmul.f32 0.5, %v711
        %v713 = vsub.f32 1.5, %v712
        %v714 = vmul.f32 %v709, %v713
        %vm715 = vweird.f32 %v665
        %vm716 = vweird.f32 %v709
        %vm717 = vmor %vm715, %vm716
        %v718 = vsel %vm717, %v709, %v714
        %v719 = vrsqrt.pop %v666
        %v720 = vmul.f32 %v719, %v666
        %v721 = vmul.f32 %v720, %v719
        %v722 = vmul.f32 0.5, %v721
        %v723 = vsub.f32 1.5, %v722
        %v724 = vmul.f32 %v719, %v723
        %vm725 = vweird.f32 %v666
        %vm726 = vweird.f32 %v719
        %vm727 = vmor %vm725, %vm726
        %v728 = vsel %vm727, %v719, %v724
        %v729 = vrsqrt.pop %v667
        %v730 = vmul.f32 %v729, %v667
        %v731 = vmul.f32 %v730, %v729
        %v732 = vmul.f32 0.5, %v731
        %v733 = vsub.f32 1.5, %v732
        %v734 = vmul.f32 %v729, %v733
        %vm735 = vweird.f32 %v667
        %vm736 = vweird.f32 %v729
        %vm737 = vmor %vm735, %vm736
        %v738 = vsel %vm737, %v729, %v734
        %v739 = vrsqrt.pop %v668
        %v740 = vmul.f32 %v739, %v668
        %v741 = vmul.f32 %v740, %v739
        %v742 = vmul.f32 0.5, %v741
        %v743 = vsub.f32 1.5, %v742
        %v744 = vmul.f32 %v739, %v743
        %vm745 = vweird.f32 %v668
        %vm746 = vweird.f32 %v739
        %vm747 = vmor %vm745, %vm746
        %v748 = vsel %vm747, %v739, %v744
        %v749 = vmul.f32 %v573, %v678
        %v750 = vmul.f32 %v574, %v688
        %v751 = vmul.f32 %v575, %v698
        %v752 = vmul.f32 %v576, %v708
        %v753 = vmul.f32 %v577, %v718
        %v754 = vmul.f32 %v578, %v728
        %v755 = vmul.f32 %v579, %v738
        %v756 = vmul.f32 %v580, %v748
        %765 = vrot.lane.b32.xlu0 %v621, 32
        %v766 = vpop.permute.xlu0 %765
        %767 = vrot.lane.b32.xlu0 %v622, 32
        %v768 = vpop.permute.xlu0 %767
        %769 = vrot.lane.b32.xlu0 %v623, 32
        %v770 = vpop.permute.xlu0 %769
        %771 = vrot.lane.b32.xlu0 %v624, 32
        %v772 = vpop.permute.xlu0 %771
        %773 = vrot.lane.b32.xlu0 %v625, 32
        %v774 = vpop.permute.xlu0 %773
        %775 = vrot.lane.b32.xlu0 %v626, 32
        %v776 = vpop.permute.xlu0 %775
        %777 = vrot.lane.b32.xlu0 %v627, 32
        %v778 = vpop.permute.xlu0 %777
        %779 = vrot.lane.b32.xlu0 %v628, 32
        %v780 = vpop.permute.xlu0 %779
        %v789 = vsel %vm345, %v749, %v766
        %v790 = vsel %vm345, %v750, %v768
        %v791 = vsel %vm345, %v751, %v770
        %v792 = vsel %vm345, %v752, %v772
        %v793 = vsel %vm345, %v753, %v774
        %v794 = vsel %vm345, %v754, %v776
        %v795 = vsel %vm345, %v755, %v778
        %v796 = vsel %vm345, %v756, %v780
        %vm797 = vcmask 285696
        %v798 = vsel %vm797, %v789, 0.0
        %v799 = vsel %vm797, %v790, 0.0
        %v800 = vsel %vm797, %v791, 0.0
        %v801 = vsel %vm797, %v792, 0.0
        %v802 = vsel %vm797, %v793, 0.0
        %v803 = vsel %vm797, %v794, 0.0
        %v804 = vsel %vm797, %v795, 0.0
        %v805 = vsel %vm797, %v796, 0.0
        %806 = vst [vmem:[%s315] sm:$0xff] %v798
        %807 = vst [vmem:[%s315 + $0x8] sm:$0xff] %v799
        %808 = vst [vmem:[%s315 + $0x10] sm:$0xff] %v800
        %809 = vst [vmem:[%s315 + $0x18] sm:$0xff] %v801
        %810 = vst [vmem:[%s315 + $0x20] sm:$0xff] %v802
        %811 = vst [vmem:[%s315 + $0x28] sm:$0xff] %v803
        %812 = vst [vmem:[%s315 + $0x30] sm:$0xff] %v804
        %813 = vst [vmem:[%s315 + $0x38] sm:$0xff] %v805
        %s814 = sand.u32 %s208, 1
        %s815 = scalar_lea.sflag [#allocation3], %s814
        %s816 = sand.u32 %s208, 1
        %s817 = smul.addr %s816, 64
        %s818 = scalar_lea.vmem [#allocation2], %s817
        // Predicated region
        $region53: #{tpu_custom_call.1} parent=51 // pred_check
          %p819 = pneg %p218
        $region54: #{tpu_custom_call.1} parent=51 // pred_check_branch
          %821 = sbr.rel (%p819) target = $region56
        $region55: #{tpu_custom_call.1} parent=51 // pred_region
          %s822 = smul.u32 8, %s22
          %824 = vsyncadd %s815, 0
          %s825 = smul.addr %s822, 8
          %s826 = scalar_lea.hbm %s8, %s825
          %s827 = sshll.u32 %s818, 4
          %s828 = int_to_ptr.vmem [resolvable:$true] %s827
          %s829 = sshll.u32 %s826, 4
          %s830 = int_to_ptr.hbm [resolvable:$true] %s829
          %835 = dma.vmem_to_hbm [thread:$0]  %s828, 1024, %s830, %s815, 128, 128, 8
        $region56: #{tpu_custom_call.1} parent=51 // pred_fallthru
          _
      $region52: #{tpu_custom_call.1} parent=5 // pred_fallthru
        _
      %p836 = scmp.le.s32.totalorder 2, %s17
      // Predicated region
      $region57: #{tpu_custom_call.1} parent=5 // pred_check
        %p837 = pneg %p836
      $region58: #{tpu_custom_call.1} parent=5 // pred_check_branch
        %839 = sbr.rel (%p837) target = $region60
      $region59: #{tpu_custom_call.1} parent=5 // pred_region
        %s840 = ssub.s32 %s17, 2
        // Predicated region
        $region61: #{tpu_custom_call.1} parent=59 // pred_check
          %p841 = pneg %p224
        $region62: #{tpu_custom_call.1} parent=59 // pred_check_branch
          %843 = sbr.rel (%p841) target = $region64
        $region63: #{tpu_custom_call.1} parent=59 // pred_region
          %s844 = sand.u32 %s209, 1
          %s845 = scalar_lea.sflag [#allocation3], %s844
          %s846 = sand.u32 %s209, 1
          %s847 = smul.addr %s846, 64
          %s848 = scalar_lea.vmem [#allocation2], %s847
          %850 = dma.done %s845, 1024
        $region64: #{tpu_custom_call.1} parent=59 // pred_fallthru
          _
      $region60: #{tpu_custom_call.1} parent=5 // pred_fallthru
        _
    $region6: #{tpu_custom_call.1} parent=1 // loop_footer
      %s21 = sadd.s32 1, %s17
    $region7: #{tpu_custom_call.1} parent=1 // loop_footer_branch
      %16 = sbr.rel target = $region3
    $region8: #{tpu_custom_call.1} parent=1 // loop_exit
      _
    %851 = vsyncpa [#allocation3], 1
    %s852 = scalar_lea.sflag [#allocation3], 1
    %853 = vsyncpa %s852, 1

</llo_original>
